<compile_context>
chip_gen: v6e
topology: v6e:2x2x1
jax: 0.10.0
libtpu: 0.0.40
codegen_flags: <defaults>
</compile_context>

<pallas_src>
import jax
import jax.numpy as jnp
from jax.experimental import pallas as pl
from jax.experimental.pallas import tpu as pltpu


def _cat_kernel(xs_ref, w_ref, b_ref, o_ref):
    # y = sum_l relu(x_l) @ W_l.T + b   (== lin(relu(concat_l x_l)))
    num_layers = xs_ref.shape[0]
    x0 = jnp.maximum(xs_ref[0], 0)                       # relu in native dtype
    acc = jnp.dot(x0, w_ref[0], preferred_element_type=jnp.float32)
    for l in range(1, num_layers):                       # static unroll, L is tiny
        x = jnp.maximum(xs_ref[l], 0)
        acc = acc + jnp.dot(x, w_ref[l], preferred_element_type=jnp.float32)
    o_ref[...] = (acc + b_ref[...].astype(jnp.float32)).astype(o_ref.dtype)


def _max_kernel(xs_ref, w_ref, b_ref, o_ref):
    # y = relu(max_l x_l) @ W.T + b
    num_layers = xs_ref.shape[0]
    m = xs_ref[0]
    for l in range(1, num_layers):                       # static unroll
        m = jnp.maximum(m, xs_ref[l])
    m = jnp.maximum(m, 0)                                # relu
    y = jnp.dot(m, w_ref[...], preferred_element_type=jnp.float32)
    o_ref[...] = (y + b_ref[...].astype(jnp.float32)).astype(o_ref.dtype)


def _pick_block_rows(n, h_in, h_out, num_layers, x_itemsize, w_bytes):
    """Largest row tile (multiple of 8, <= 1024) dividing n whose live buffers
    (2x double-buffered xs block + 2x output block + resident weights) stay
    under a ~14 MiB budget (fits v5e/v6e/v7x scoped VMEM limits)."""
    budget = 14 * 1024 * 1024
    row_bytes = 2 * num_layers * h_in * x_itemsize + 2 * h_out * 4
    avail = max(row_bytes, budget - 2 * w_bytes)
    cap = min(1024, avail // row_bytes)
    cap = max(8, cap - cap % 8)
    if n <= cap or n % 8 != 0:
        return n                       # single full-extent tile (always legal)
    tn = cap
    while tn >= 8:
        if n % tn == 0:
            return tn
        tn -= 8
    return n


def la_aggregator(xs, weight, bias, mode):
    """xs: [L, N, H] stacked per-layer node features.
    weight: [H, H*L] for 'cat', [H, H] for 'max' (PyTorch [out, in] layout).
    bias:   [H].  Returns [N, H]."""
    L, N, H = xs.shape
    out_dtype = xs.dtype
    H_out = weight.shape[0]
    b2d = bias.reshape(1, H_out)

    if mode == "cat":
        assert weight.shape == (H_out, L * H)
        # [H_out, L*H_in] -> [L, H_in, H_out]: per-layer W_l.T, done once host-side.
        w = weight.reshape(H_out, L, H).transpose(1, 2, 0)
        kernel = _cat_kernel
        w_spec = pl.BlockSpec((L, H, H_out), lambda n: (0, 0, 0))   # resident weights
    elif mode == "max":
        assert weight.shape == (H_out, H) and H_out == H
        w = weight.T                                                # [H_in, H_out]
        kernel = _max_kernel
        w_spec = pl.BlockSpec((H, H_out), lambda n: (0, 0))         # resident weight
    else:
        # TODO(synk): 'lstm' JumpingKnowledge (BiLSTM + attention scoring) not implemented.
        raise NotImplementedError(f"mode {mode!r} not supported")

    tn = _pick_block_rows(N, H, H_out, L, xs.dtype.itemsize,
                          w.size * w.dtype.itemsize)
    grid = (N // tn,)

    return pl.pallas_call(
        kernel,
        out_shape=jax.ShapeDtypeStruct((N, H_out), out_dtype),
        grid_spec=pltpu.PrefetchScalarGridSpec(
            num_scalar_prefetch=0,
            grid=grid,
            in_specs=[
                pl.BlockSpec((L, tn, H), lambda n: (0, n, 0)),
                w_spec,
                pl.BlockSpec((1, H_out), lambda n: (0, 0)),
            ],
            out_specs=pl.BlockSpec((tn, H_out), lambda n: (n, 0)),
        ),
        compiler_params=pltpu.CompilerParams(
            dimension_semantics=("parallel",),
            vmem_limit_bytes=32 * 1024 * 1024,
        ),
    )(xs, w, b2d)


def _reference(xs, weight, bias, mode):
    xs32 = xs.astype(jnp.float32)
    if mode == "cat":
        jumped = jnp.concatenate([xs32[l] for l in range(xs.shape[0])], axis=-1)
    else:  # max
        jumped = jnp.max(xs32, axis=0)
    return (jnp.maximum(jumped, 0.0) @ weight.astype(jnp.float32).T
            + bias.astype(jnp.float32))


def _check(xs, weight, bias, mode, atol, rtol):
    out = jax.block_until_ready(la_aggregator(xs, weight, bias, mode))
    ref = _reference(xs, weight, bias, mode)
    out32 = out.astype(jnp.float32)
    good = bool(jnp.allclose(out32, ref, atol=atol, rtol=rtol))
    if not good:
        print(f"mode={mode} dtype={xs.dtype} N={xs.shape[1]} H={xs.shape[2]} "
              f"mismatch, max abs err {float(jnp.max(jnp.abs(out32 - ref)))}")
    return good


if __name__ == "__main__":
    ok = True

    # --- small config matching the module defaults (hidden_size=32, num_layers=3) ---
    L, N, H = 3, 8, 32
    k_x, k_wc, k_bc, k_wm, k_bm = jax.random.split(jax.random.PRNGKey(0), 5)
    xs = jax.random.normal(k_x, (L, N, H), dtype=jnp.float32)
    w_cat = jax.random.normal(k_wc, (H, H * L), dtype=jnp.float32) * 0.1
    b_cat = jax.random.normal(k_bc, (H,), dtype=jnp.float32) * 0.1
    w_max = jax.random.normal(k_wm, (H, H), dtype=jnp.float32) * 0.1
    b_max = jax.random.normal(k_bm, (H,), dtype=jnp.float32) * 0.1
    ok &= _check(xs, w_cat, b_cat, "cat", atol=1e-4, rtol=1e-4)
    ok &= _check(xs, w_max, b_max, "max", atol=1e-4, rtol=1e-4)

    # --- larger config exercising the node-row tiling path (grid = (4,)) ---
    L2, N2, H2 = 3, 4096, 128
    k2 = jax.random.split(jax.random.PRNGKey(1), 5)
    xs2 = jax.random.normal(k2[0], (L2, N2, H2), dtype=jnp.float32)
    w_cat2 = jax.random.normal(k2[1], (H2, H2 * L2), dtype=jnp.float32) * 0.05
    b_cat2 = jax.random.normal(k2[2], (H2,), dtype=jnp.float32) * 0.1
    w_max2 = jax.random.normal(k2[3], (H2, H2), dtype=jnp.float32) * 0.05
    b_max2 = jax.random.normal(k2[4], (H2,), dtype=jnp.float32) * 0.1
    ok &= _check(xs2, w_cat2, b_cat2, "cat", atol=1e-2, rtol=1e-2)
    ok &= _check(xs2, w_max2, b_max2, "max", atol=1e-2, rtol=1e-2)

    # --- bf16 operands (full-rate MXU path; f32 accumulation in-register) ---
    xs_bf = xs2.astype(jnp.bfloat16)
    ok &= _check(xs_bf, w_cat2.astype(jnp.bfloat16), b_cat2, "cat",
                 atol=3e-2, rtol=3e-2)
    ok &= _check(xs_bf, w_max2.astype(jnp.bfloat16), b_max2, "max",
                 atol=3e-2, rtol=3e-2)

    if ok:
        print("KERNEL_OK")
</pallas_src>

<mosaic_0001>
module attributes {stable_mosaic.version = 11 : i64} {
  func.func @_cat_kernel(%arg0: i32, %arg1: memref<3x8x32xf32, #tpu.memory_space<vmem>>, %arg2: memref<3x32x32xf32, #tpu.memory_space<vmem>>, %arg3: memref<1x32xf32, #tpu.memory_space<vmem>>, %arg4: memref<8x32xf32, #tpu.memory_space<vmem>>) attributes {dimension_semantics = [#tpu.dimension_semantics<parallel>], iteration_bounds = array<i64: 1>, scalar_prefetch = 0 : i64, scratch_operands = 0 : i64, tpu.core_type = #tpu.core_type<tc>, window_params = [{transform_indices = @transform_0, window_bounds = array<i64: 3, 8, 32>}, {pipeline_mode = #tpu.pipeline_mode<synchronous>, transform_indices = @transform_1, window_bounds = array<i64: 3, 32, 32>}, {pipeline_mode = #tpu.pipeline_mode<synchronous>, transform_indices = @transform_2, window_bounds = array<i64: 1, 32>}, {transform_indices = @transform_3, window_bounds = array<i64: 8, 32>}]} {
    %c0 = arith.constant 0 : index
    %c0_0 = arith.constant 0 : index
    %c0_1 = arith.constant 0 : index
    %0 = vector.load %arg1[%c0, %c0_0, %c0_1] : memref<3x8x32xf32, #tpu.memory_space<vmem>>, vector<1x8x32xf32>
    %1 = vector.shape_cast %0 : vector<1x8x32xf32> to vector<8x32xf32>
    %cst = arith.constant 0.000000e+00 : f32
    %2 = vector.broadcast %cst : f32 to vector<8x32xf32>
    %3 = arith.maximumf %1, %2 : vector<8x32xf32>
    %c0_2 = arith.constant 0 : index
    %c0_3 = arith.constant 0 : index
    %c0_4 = arith.constant 0 : index
    %4 = vector.load %arg2[%c0_2, %c0_3, %c0_4] : memref<3x32x32xf32, #tpu.memory_space<vmem>>, vector<1x32x32xf32>
    %5 = vector.shape_cast %4 : vector<1x32x32xf32> to vector<32x32xf32>
    %cst_5 = arith.constant dense<0.000000e+00> : vector<8x32xf32>
    %6 = tpu.matmul %3, %5, %cst_5 {dimension_numbers = #tpu.dot_dimension_numbers<[1], [0], [0], [1], [0, 0, 1, 1], [], []>} : vector<8x32xf32>, vector<32x32xf32>, vector<8x32xf32> -> vector<8x32xf32>
    %c1 = arith.constant 1 : index
    %c0_6 = arith.constant 0 : index
    %c0_7 = arith.constant 0 : index
    %7 = vector.load %arg1[%c1, %c0_6, %c0_7] : memref<3x8x32xf32, #tpu.memory_space<vmem>>, vector<1x8x32xf32>
    %8 = vector.shape_cast %7 : vector<1x8x32xf32> to vector<8x32xf32>
    %cst_8 = arith.constant 0.000000e+00 : f32
    %9 = vector.broadcast %cst_8 : f32 to vector<8x32xf32>
    %10 = arith.maximumf %8, %9 : vector<8x32xf32>
    %c1_9 = arith.constant 1 : index
    %c0_10 = arith.constant 0 : index
    %c0_11 = arith.constant 0 : index
    %11 = vector.load %arg2[%c1_9, %c0_10, %c0_11] : memref<3x32x32xf32, #tpu.memory_space<vmem>>, vector<1x32x32xf32>
    %12 = vector.shape_cast %11 : vector<1x32x32xf32> to vector<32x32xf32>
    %cst_12 = arith.constant dense<0.000000e+00> : vector<8x32xf32>
    %13 = tpu.matmul %10, %12, %cst_12 {dimension_numbers = #tpu.dot_dimension_numbers<[1], [0], [0], [1], [0, 0, 1, 1], [], []>} : vector<8x32xf32>, vector<32x32xf32>, vector<8x32xf32> -> vector<8x32xf32>
    %14 = arith.addf %6, %13 : vector<8x32xf32>
    %c2 = arith.constant 2 : index
    %c0_13 = arith.constant 0 : index
    %c0_14 = arith.constant 0 : index
    %15 = vector.load %arg1[%c2, %c0_13, %c0_14] : memref<3x8x32xf32, #tpu.memory_space<vmem>>, vector<1x8x32xf32>
    %16 = vector.shape_cast %15 : vector<1x8x32xf32> to vector<8x32xf32>
    %cst_15 = arith.constant 0.000000e+00 : f32
    %17 = vector.broadcast %cst_15 : f32 to vector<8x32xf32>
    %18 = arith.maximumf %16, %17 : vector<8x32xf32>
    %c2_16 = arith.constant 2 : index
    %c0_17 = arith.constant 0 : index
    %c0_18 = arith.constant 0 : index
    %19 = vector.load %arg2[%c2_16, %c0_17, %c0_18] : memref<3x32x32xf32, #tpu.memory_space<vmem>>, vector<1x32x32xf32>
    %20 = vector.shape_cast %19 : vector<1x32x32xf32> to vector<32x32xf32>
    %cst_19 = arith.constant dense<0.000000e+00> : vector<8x32xf32>
    %21 = tpu.matmul %18, %20, %cst_19 {dimension_numbers = #tpu.dot_dimension_numbers<[1], [0], [0], [1], [0, 0, 1, 1], [], []>} : vector<8x32xf32>, vector<32x32xf32>, vector<8x32xf32> -> vector<8x32xf32>
    %22 = arith.addf %14, %21 : vector<8x32xf32>
    %c0_20 = arith.constant 0 : index
    %c0_21 = arith.constant 0 : index
    %23 = vector.load %arg3[%c0_20, %c0_21] : memref<1x32xf32, #tpu.memory_space<vmem>>, vector<1x32xf32>
    %24 = vector.broadcast %23 : vector<1x32xf32> to vector<8x32xf32>
    %25 = arith.addf %22, %24 : vector<8x32xf32>
    %c0_22 = arith.constant 0 : index
    %c0_23 = arith.constant 0 : index
    %26 = vector.load %arg4[%c0_22, %c0_23] : memref<8x32xf32, #tpu.memory_space<vmem>>, vector<8x32xf32>
    tpu.vector_store %arg4[%c0_22, %c0_23], %25 {strides = array<i32>} : memref<8x32xf32, #tpu.memory_space<vmem>>, vector<8x32xf32>,
    return
  }
  func.func @transform_0(%arg0: i32) -> (i32, i32, i32) {
    %c0_i32 = arith.constant 0 : i32
    %c0_i32_0 = arith.constant 0 : i32
    %c0_i32_1 = arith.constant 0 : i32
    return %c0_i32, %arg0, %c0_i32_0 : i32, i32, i32
  }
  func.func @transform_1(%arg0: i32) -> (i32, i32, i32) {
    %c0_i32 = arith.constant 0 : i32
    %c0_i32_0 = arith.constant 0 : i32
    %c0_i32_1 = arith.constant 0 : i32
    %c0_i32_2 = arith.constant 0 : i32
    return %c0_i32, %c0_i32_0, %c0_i32_1 : i32, i32, i32
  }
  func.func @transform_2(%arg0: i32) -> (i32, i32) {
    %c0_i32 = arith.constant 0 : i32
    %c0_i32_0 = arith.constant 0 : i32
    %c0_i32_1 = arith.constant 0 : i32
    return %c0_i32, %c0_i32_0 : i32, i32
  }
  func.func @transform_3(%arg0: i32) -> (i32, i32) {
    %c0_i32 = arith.constant 0 : i32
    %c0_i32_0 = arith.constant 0 : i32
    return %arg0, %c0_i32 : i32, i32
  }
}

</mosaic_0001>

<llo_original>
// kernel: tpu_custom_call.1
$region0: #{tpu_custom_call.1}
  #allocation0 [shape = 'u32[]', space=smem, size = 0x4, offset = 0x4, fixed_abs, tag = 'smem constant byte address 0x4 - core index']
  #allocation1 [shape = 'u32[144,128]{1,0:T(1,128)}', space=vmem, size = 0x12000, scoped, tag = 'internal scratch']
  %s0 = inlined_call_operand.hbm [shape: f32[3,8,32], index: 0, kind: input, shape index: {}]
  %s1 = inlined_call_operand.hbm [shape: f32[3,32,32], index: 1, kind: input, shape index: {}]
  %s2 = inlined_call_operand.vmem [shape: f32[1,32], index: 2, kind: input, shape index: {}]
  %s3 = inlined_call_operand.hbm [shape: f32[8,32], index: 3, kind: output, shape index: {}]
  %s4 = sld [smem:[#allocation0]]
  $region30: #{tpu_custom_call.1} parent=0
    _
  %s6 = ssub.s32 1, %s4
  %s7 = scalar_select 0, %s6, %s4
  $region1: #{tpu_custom_call.1} parent=0
    #allocation2 [shape = 'u8[12288]{0}', space=vmem, size = 0x3000, scoped, tag = 'input window, operand 0, single buffered']
    #allocation3 [shape = 's32[1]{0}', space=sflag, size = 0x4, scoped, tag = 'scoped memory for tpu_custom_call.1']
    #allocation4 [shape = 's32[1]{0}', space=sflag, size = 0x4, scoped, tag = 'scoped memory for tpu_custom_call.1']
    #allocation5 [shape = 'u8[49152]{0}', space=vmem, size = 0xc000, scoped, tag = 'input window, operand 1, single buffered']
    #allocation6 [shape = 's32[1]{0}', space=sflag, size = 0x4, scoped, tag = 'scoped memory for tpu_custom_call.1']
    #allocation7 [shape = 'u8[4096]{0}', space=vmem, size = 0x1000, scoped, tag = 'output window, operand 0, single buffered']
    %8 = vsyncpa [#allocation3], 0
    %9 = vsyncpa [#allocation6], 0
    %10 = vsyncpa [#allocation4], 0
    // Predicated region
    $region2: #{tpu_custom_call.1} parent=1 // pred_check
      _
    $region3: #{tpu_custom_call.1} parent=1 // pred_check_branch
      %12 = sbr.rel (0) target = $region5
    $region4: #{tpu_custom_call.1} parent=1 // pred_region
      %s14 = ssub.s32 384, 384
      %15 = vsyncadd [#allocation3], %s14
      %s16 = sshll.u32 [#allocation2], 4
      %s17 = int_to_ptr.vmem [resolvable:$true] %s16
      %22 = dma.hbm_to_vmem [thread:$0]  %s0, 384, %s17, [#allocation3], 128, 128, 8
    $region5: #{tpu_custom_call.1} parent=1 // pred_fallthru
      _
    // Predicated region
    $region6: #{tpu_custom_call.1} parent=1 // pred_check
      _
    $region7: #{tpu_custom_call.1} parent=1 // pred_check_branch
      %24 = sbr.rel (0) target = $region9
    $region8: #{tpu_custom_call.1} parent=1 // pred_region
      %s26 = ssub.s32 1536, 1536
      %27 = vsyncadd [#allocation6], %s26
      %s28 = sshll.u32 [#allocation5], 4
      %s29 = int_to_ptr.vmem [resolvable:$true] %s28
      %34 = dma.hbm_to_vmem [thread:$0]  %s1, 1536, %s29, [#allocation6], 128, 128, 8
    $region9: #{tpu_custom_call.1} parent=1 // pred_fallthru
      _
    // Predicated region
    $region10: #{tpu_custom_call.1} parent=1 // pred_check
      _
    $region11: #{tpu_custom_call.1} parent=1 // pred_check_branch
      %36 = sbr.rel (0) target = $region13
    $region12: #{tpu_custom_call.1} parent=1 // pred_region
      _
    $region13: #{tpu_custom_call.1} parent=1 // pred_fallthru
      _
    // Predicated region
    $region14: #{tpu_custom_call.1} parent=1 // pred_check
      _
    $region15: #{tpu_custom_call.1} parent=1 // pred_check_branch
      %38 = sbr.rel (0) target = $region17
    $region16: #{tpu_custom_call.1} parent=1 // pred_region
      %39 = dma.done [#allocation3], 384
    $region17: #{tpu_custom_call.1} parent=1 // pred_fallthru
      _
    // Predicated region
    $region18: #{tpu_custom_call.1} parent=1 // pred_check
      _
    $region19: #{tpu_custom_call.1} parent=1 // pred_check_branch
      %41 = sbr.rel (0) target = $region21
    $region20: #{tpu_custom_call.1} parent=1 // pred_region
      %42 = dma.done [#allocation6], 1536
    $region21: #{tpu_custom_call.1} parent=1 // pred_fallthru
      _
    %v43 = vld [vmem:[#allocation2] sm:$0xff]
    %v44 = vmax.f32 %v43, 0.0
    %v45 = vld [vmem:[#allocation5] sm:$0xff]
    %v46 = vld [vmem:[#allocation5 + $0x8] sm:$0xff]
    %v47 = vld [vmem:[#allocation5 + $0x10] sm:$0xff]
    %v48 = vld [vmem:[#allocation5 + $0x18] sm:$0xff]
    %s49 = scalar_lea.vmem [#allocation2], 8
    %v50 = vld [vmem:[%s49] sm:$0xff]
    %v51 = vmax.f32 %v50, 0.0
    %s52 = scalar_lea.vmem [#allocation5], 32
    %v53 = vld [vmem:[%s52] sm:$0xff]
    %v54 = vld [vmem:[%s52 + $0x8] sm:$0xff]
    %v55 = vld [vmem:[%s52 + $0x10] sm:$0xff]
    %v56 = vld [vmem:[%s52 + $0x18] sm:$0xff]
    %vm57 = vcmask 261120
    %v59 = vsel %vm57, %v51, 0
    %61 = vmatprep.subr.mxu0 0.0
    %62 = vmatpush1.msra.mxu0 0.0
    %63 = vmatprep.subr.mxu0 0.0
    %64 = vmatpush1.msra.mxu0 0.0
    %65 = vmatprep.subr.mxu0 0.0
    %66 = vmatpush1.msra.mxu0 0.0
    %67 = vmatprep.subr.mxu0 0.0
    %68 = vmatpush1.msra.mxu0 0.0
    %69 = vmatprep.subr.mxu0 0.0
    %70 = vmatpush1.msra.mxu0 0.0
    %71 = vmatprep.subr.mxu0 0.0
    %72 = vmatpush1.msra.mxu0 0.0
    %73 = vmatprep.subr.mxu0 0.0
    %74 = vmatpush1.msra.mxu0 0.0
    %75 = vmatprep.subr.mxu0 0.0
    %76 = vmatpush1.msra.mxu0 0.0
    %77 = vmatprep.subr.mxu0 0.0
    %78 = vmatpush1.msra.mxu0 0.0
    %79 = vmatprep.subr.mxu0 0.0
    %80 = vmatpush1.msra.mxu0 0.0
    %81 = vmatprep.subr.mxu0 0.0
    %82 = vmatpush1.msra.mxu0 0.0
    %83 = vmatprep.subr.mxu0 0.0
    %84 = vmatpush1.msra.mxu0 0.0
    %85 = vmatprep.subr.mxu0 0.0
    %86 = vmatpush1.msra.mxu0 %v56
    %87 = vmatprep.subr.mxu0 0.0
    %88 = vmatpush1.msra.mxu0 %v55
    %89 = vmatprep.subr.mxu0 0.0
    %90 = vmatpush1.msra.mxu0 %v54
    %91 = vmatprep.subr.mxu0 0.0
    %92 = vmatpush1.msra.mxu0 %v53
    %93 = vmatprep.subr.mxu0 0.0
    %94 = vmatpush2.msra.mxu0 0.0
    %95 = vmatprep.subr.mxu0 0.0
    %96 = vmatpush2.msra.mxu0 0.0
    %97 = vmatprep.subr.mxu0 0.0
    %98 = vmatpush2.msra.mxu0 0.0
    %99 = vmatprep.subr.mxu0 0.0
    %100 = vmatpush2.msra.mxu0 0.0
    %101 = vmatprep.subr.mxu0 0.0
    %102 = vmatpush2.msra.mxu0 0.0
    %103 = vmatprep.subr.mxu0 0.0
    %104 = vmatpush2.msra.mxu0 0.0
    %105 = vmatprep.subr.mxu0 0.0
    %106 = vmatpush2.msra.mxu0 0.0
    %107 = vmatprep.subr.mxu0 0.0
    %108 = vmatpush2.msra.mxu0 0.0
    %109 = vmatprep.subr.mxu0 0.0
    %110 = vmatpush2.msra.mxu0 0.0
    %111 = vmatprep.subr.mxu0 0.0
    %112 = vmatpush2.msra.mxu0 0.0
    %113 = vmatprep.subr.mxu0 0.0
    %114 = vmatpush2.msra.mxu0 0.0
    %115 = vmatprep.subr.mxu0 0.0
    %116 = vmatpush2.msra.mxu0 0.0
    %117 = vmatprep.subr.mxu0 0.0
    %118 = vmatpush2.msra.mxu0 0.0
    %119 = vmatprep.subr.mxu0 0.0
    %120 = vmatpush2.msra.mxu0 0.0
    %121 = vmatprep.subr.mxu0 0.0
    %122 = vmatpush2.msra.mxu0 0.0
    %123 = vmatprep.subr.mxu0 0.0
    %124 = vmatpush2.msra.mxu0 0.0
    %125 = vmatprep.mubr.f32.mxu0 0.0
    %126 = vmatmul.mubr.f32.gmra.mxu0 %v59
    %v127 = vpop.f32.mrf.mxu0
    %v128 = vadd.f32 0.0, %v127
    %v129 = vpop.f32.mrf.mxu0
    %130 = vdwg.mxu0
    %v132 = vsel %vm57, %v44, 0
    %134 = vmatprep.subr.mxu0 0.0
    %135 = vmatpush1.msra.mxu0 0.0
    %136 = vmatprep.subr.mxu0 0.0
    %137 = vmatpush1.msra.mxu0 0.0
    %138 = vmatprep.subr.mxu0 0.0
    %139 = vmatpush1.msra.mxu0 0.0
    %140 = vmatprep.subr.mxu0 0.0
    %141 = vmatpush1.msra.mxu0 0.0
    %142 = vmatprep.subr.mxu0 0.0
    %143 = vmatpush1.msra.mxu0 0.0
    %144 = vmatprep.subr.mxu0 0.0
    %145 = vmatpush1.msra.mxu0 0.0
    %146 = vmatprep.subr.mxu0 0.0
    %147 = vmatpush1.msra.mxu0 0.0
    %148 = vmatprep.subr.mxu0 0.0
    %149 = vmatpush1.msra.mxu0 0.0
    %150 = vmatprep.subr.mxu0 0.0
    %151 = vmatpush1.msra.mxu0 0.0
    %152 = vmatprep.subr.mxu0 0.0
    %153 = vmatpush1.msra.mxu0 0.0
    %154 = vmatprep.subr.mxu0 0.0
    %155 = vmatpush1.msra.mxu0 0.0
    %156 = vmatprep.subr.mxu0 0.0
    %157 = vmatpush1.msra.mxu0 0.0
    %158 = vmatprep.subr.mxu0 0.0
    %159 = vmatpush1.msra.mxu0 %v48
    %160 = vmatprep.subr.mxu0 0.0
    %161 = vmatpush1.msra.mxu0 %v47
    %162 = vmatprep.subr.mxu0 0.0
    %163 = vmatpush1.msra.mxu0 %v46
    %164 = vmatprep.subr.mxu0 0.0
    %165 = vmatpush1.msra.mxu0 %v45
    %166 = vmatprep.subr.mxu0 0.0
    %167 = vmatpush2.msra.mxu0 0.0
    %168 = vmatprep.subr.mxu0 0.0
    %169 = vmatpush2.msra.mxu0 0.0
    %170 = vmatprep.subr.mxu0 0.0
    %171 = vmatpush2.msra.mxu0 0.0
    %172 = vmatprep.subr.mxu0 0.0
    %173 = vmatpush2.msra.mxu0 0.0
    %174 = vmatprep.subr.mxu0 0.0
    %175 = vmatpush2.msra.mxu0 0.0
    %176 = vmatprep.subr.mxu0 0.0
    %177 = vmatpush2.msra.mxu0 0.0
    %178 = vmatprep.subr.mxu0 0.0
    %179 = vmatpush2.msra.mxu0 0.0
    %180 = vmatprep.subr.mxu0 0.0
    %181 = vmatpush2.msra.mxu0 0.0
    %182 = vmatprep.subr.mxu0 0.0
    %183 = vmatpush2.msra.mxu0 0.0
    %184 = vmatprep.subr.mxu0 0.0
    %185 = vmatpush2.msra.mxu0 0.0
    %186 = vmatprep.subr.mxu0 0.0
    %187 = vmatpush2.msra.mxu0 0.0
    %188 = vmatprep.subr.mxu0 0.0
    %189 = vmatpush2.msra.mxu0 0.0
    %190 = vmatprep.subr.mxu0 0.0
    %191 = vmatpush2.msra.mxu0 0.0
    %192 = vmatprep.subr.mxu0 0.0
    %193 = vmatpush2.msra.mxu0 0.0
    %194 = vmatprep.subr.mxu0 0.0
    %195 = vmatpush2.msra.mxu0 0.0
    %196 = vmatprep.subr.mxu0 0.0
    %197 = vmatpush2.msra.mxu0 0.0
    %198 = vmatprep.mubr.f32.mxu0 0.0
    %199 = vmatmul.mubr.f32.gmra.mxu0 %v132
    %v200 = vpop.f32.mrf.mxu0
    %v201 = vadd.f32 %v128, %v200
    %v202 = vpop.f32.mrf.mxu0
    %203 = vdwg.mxu0
    %s204 = scalar_lea.vmem [#allocation2], 16
    %v205 = vld [vmem:[%s204] sm:$0xff]
    %v206 = vmax.f32 %v205, 0.0
    %s207 = scalar_lea.vmem [#allocation5], 64
    %v208 = vld [vmem:[%s207] sm:$0xff]
    %v209 = vld [vmem:[%s207 + $0x8] sm:$0xff]
    %v210 = vld [vmem:[%s207 + $0x10] sm:$0xff]
    %v211 = vld [vmem:[%s207 + $0x18] sm:$0xff]
    %v213 = vsel %vm57, %v206, 0
    %215 = vmatprep.subr.mxu0 0.0
    %216 = vmatpush1.msra.mxu0 0.0
    %217 = vmatprep.subr.mxu0 0.0
    %218 = vmatpush1.msra.mxu0 0.0
    %219 = vmatprep.subr.mxu0 0.0
    %220 = vmatpush1.msra.mxu0 0.0
    %221 = vmatprep.subr.mxu0 0.0
    %222 = vmatpush1.msra.mxu0 0.0
    %223 = vmatprep.subr.mxu0 0.0
    %224 = vmatpush1.msra.mxu0 0.0
    %225 = vmatprep.subr.mxu0 0.0
    %226 = vmatpush1.msra.mxu0 0.0
    %227 = vmatprep.subr.mxu0 0.0
    %228 = vmatpush1.msra.mxu0 0.0
    %229 = vmatprep.subr.mxu0 0.0
    %230 = vmatpush1.msra.mxu0 0.0
    %231 = vmatprep.subr.mxu0 0.0
    %232 = vmatpush1.msra.mxu0 0.0
    %233 = vmatprep.subr.mxu0 0.0
    %234 = vmatpush1.msra.mxu0 0.0
    %235 = vmatprep.subr.mxu0 0.0
    %236 = vmatpush1.msra.mxu0 0.0
    %237 = vmatprep.subr.mxu0 0.0
    %238 = vmatpush1.msra.mxu0 0.0
    %239 = vmatprep.subr.mxu0 0.0
    %240 = vmatpush1.msra.mxu0 %v211
    %241 = vmatprep.subr.mxu0 0.0
    %242 = vmatpush1.msra.mxu0 %v210
    %243 = vmatprep.subr.mxu0 0.0
    %244 = vmatpush1.msra.mxu0 %v209
    %245 = vmatprep.subr.mxu0 0.0
    %246 = vmatpush1.msra.mxu0 %v208
    %247 = vmatprep.subr.mxu0 0.0
    %248 = vmatpush2.msra.mxu0 0.0
    %249 = vmatprep.subr.mxu0 0.0
    %250 = vmatpush2.msra.mxu0 0.0
    %251 = vmatprep.subr.mxu0 0.0
    %252 = vmatpush2.msra.mxu0 0.0
    %253 = vmatprep.subr.mxu0 0.0
    %254 = vmatpush2.msra.mxu0 0.0
    %255 = vmatprep.subr.mxu0 0.0
    %256 = vmatpush2.msra.mxu0 0.0
    %257 = vmatprep.subr.mxu0 0.0
    %258 = vmatpush2.msra.mxu0 0.0
    %259 = vmatprep.subr.mxu0 0.0
    %260 = vmatpush2.msra.mxu0 0.0
    %261 = vmatprep.subr.mxu0 0.0
    %262 = vmatpush2.msra.mxu0 0.0
    %263 = vmatprep.subr.mxu0 0.0
    %264 = vmatpush2.msra.mxu0 0.0
    %265 = vmatprep.subr.mxu0 0.0
    %266 = vmatpush2.msra.mxu0 0.0
    %267 = vmatprep.subr.mxu0 0.0
    %268 = vmatpush2.msra.mxu0 0.0
    %269 = vmatprep.subr.mxu0 0.0
    %270 = vmatpush2.msra.mxu0 0.0
    %271 = vmatprep.subr.mxu0 0.0
    %272 = vmatpush2.msra.mxu0 0.0
    %273 = vmatprep.subr.mxu0 0.0
    %274 = vmatpush2.msra.mxu0 0.0
    %275 = vmatprep.subr.mxu0 0.0
    %276 = vmatpush2.msra.mxu0 0.0
    %277 = vmatprep.subr.mxu0 0.0
    %278 = vmatpush2.msra.mxu0 0.0
    %279 = vmatprep.mubr.f32.mxu0 0.0
    %280 = vmatmul.mubr.f32.gmra.mxu0 %v213
    %v281 = vpop.f32.mrf.mxu0
    %v282 = vadd.f32 0.0, %v281
    %v283 = vpop.f32.mrf.mxu0
    %284 = vdwg.mxu0
    %v285 = vadd.f32 %v201, %v282
    %v286 = vld [vmem:[%s2] sm:$0x1]
    %v288 = vlaneseq
    %v289 = vshrl.u32 %v288, 7
    %v290 = vsub.s32 0, %v289
    %v291 = vrot.slane %v286, %v290
    %v293 = vadd.f32 %v285, %v291
    %294 = vst.msk [vmem:[#allocation7] sm:$0xff] %vm57, %v293
    // Predicated region
    $region22: #{tpu_custom_call.1} parent=1 // pred_check
      _
    $region23: #{tpu_custom_call.1} parent=1 // pred_check_branch
      %296 = sbr.rel (0) target = $region25
    $region24: #{tpu_custom_call.1} parent=1 // pred_region
      %s298 = ssub.s32 128, 128
      %299 = vsyncadd [#allocation4], %s298
      %s301 = sshll.u32 [#allocation7], 4
      %s302 = int_to_ptr.vmem [resolvable:$true] %s301
      %304 = dma.vmem_to_hbm [thread:$0]  %s302, 128, %s3, [#allocation4]
    $region25: #{tpu_custom_call.1} parent=1 // pred_fallthru
      _
    // Predicated region
    $region26: #{tpu_custom_call.1} parent=1 // pred_check
      _
    $region27: #{tpu_custom_call.1} parent=1 // pred_check_branch
      %306 = sbr.rel (0) target = $region29
    $region28: #{tpu_custom_call.1} parent=1 // pred_region
      %307 = dma.done [#allocation4], 128
    $region29: #{tpu_custom_call.1} parent=1 // pred_fallthru
      _
    %308 = vsyncpa [#allocation3], 1
    %309 = vsyncpa [#allocation6], 1
    %310 = vsyncpa [#allocation4], 1

</llo_original>
